<compile_context>
chip_gen: v5e
topology: v5e:2x2
jax: 0.10.0
libtpu: 0.0.40
codegen_flags: <defaults>
</compile_context>

<pallas_src>
import numpy as np
import jax
import jax.numpy as jnp
from jax import lax
from jax.experimental import pallas as pl
from jax.experimental.pallas import tpu as pltpu


_LANES = 128                      # samples per row of the interleaved view
_PRIOR = (0.9934, 0.0066)         # deterministic parameter from the module __init__


def _loss_kernel(nv_ref, dlp_ref, logits_ref, target_ref, out_ref):
    """One grid step: partial sum of per-sample 2-class CE losses.

    nv_ref:     (1,)  int32 SMEM   true (unpadded) sample count
    dlp_ref:    (1,)  f32   SMEM   log_prior[1] - log_prior[0]
    logits_ref: (TR, 256)   VMEM   interleaved [y0, y1] pairs, 128 samples/row
    target_ref: (TR, 128)   VMEM   int32 class ids, sample j of row r at lane j
    out_ref:    (1, 8, 128) VMEM   this tile's partial loss sum (broadcast)
    """
    pid = pl.program_id(0)
    nsteps = pl.num_programs(0)
    tr = logits_ref.shape[0]
    two_c = logits_ref.shape[1]                      # 2 * 128

    y = logits_ref[...].astype(jnp.float32)          # (TR, 256)
    t = target_ref[...]                              # (TR, 128) int32

    # Deinterleave + subtract via a tiny +/-1 matmul on the otherwise-idle MXU:
    #   d_raw[:, j] = y[:, 2j+1] - y[:, 2j]   (= logit[class1] - logit[class0])
    k_i = lax.broadcasted_iota(jnp.int32, (two_c, _LANES), 0)
    j_i = lax.broadcasted_iota(jnp.int32, (two_c, _LANES), 1)
    pair = jnp.where(k_i == 2 * j_i, jnp.float32(-1.0),
                     jnp.where(k_i == 2 * j_i + 1, jnp.float32(1.0),
                               jnp.float32(0.0)))
    d = jnp.dot(y, pair, preferred_element_type=jnp.float32,
                precision=lax.Precision.HIGHEST)     # (TR, 128), exact +/- sums
    d = d + dlp_ref[0]                               # + (lp1 - lp0)

    # Stable 2-class cross entropy: loss = softplus(z), z = d if t==0 else -d.
    z = jnp.where(t == 0, d, -d)
    loss = jnp.maximum(z, 0.0) + jnp.log(1.0 + jnp.exp(-jnp.abs(d)))   # |z| == |d|

    @pl.when(pid < nsteps - 1)
    def _interior_tile():            # interior tiles are fully valid -> unmasked sum
        out_ref[...] = jnp.broadcast_to(jnp.sum(loss), out_ref.shape)

    @pl.when(pid == nsteps - 1)
    def _last_tile():                # ragged/padded samples only live in the last tile
        row = lax.broadcasted_iota(jnp.int32, (tr, _LANES), 0)
        lane = lax.broadcasted_iota(jnp.int32, (tr, _LANES), 1)
        sample = (pid * tr + row) * _LANES + lane
        masked = jnp.where(sample < nv_ref[0], loss, 0.0)   # select: garbage-safe
        out_ref[...] = jnp.broadcast_to(jnp.sum(masked), out_ref.shape)


def logits_loss(logits, target, log_prior=None, *, block_rows=4096):
    """logits: (N, 2) f32/bf16, target: (N,) int, log_prior: (2,) f32 -> scalar."""
    if log_prior is None:
        log_prior = jnp.asarray(np.log(np.asarray(_PRIOR)), dtype=jnp.float32)
    n, c = logits.shape
    if c != 2:
        # TODO(synk): generic-C path (tile C, online logsumexp) for other heads.
        raise NotImplementedError("kernel is specialised for the module's 2-class head")

    sub = 16 if logits.dtype == jnp.bfloat16 else 8   # sublane granularity
    r = -(-n // _LANES)                               # rows of 128 samples
    n128 = r * _LANES
    if n128 != n:
        # Tail-only pad so the free row-major reshape below is legal; happens
        # only when N is not a multiple of 128 (padded samples masked in-kernel).
        # TODO(synk): fully pad-free ragged tail via a separate epilogue block.
        logits = jnp.pad(logits, ((0, n128 - n), (0, 0)))
        target = jnp.pad(target, (0, n128 - n))

    # Free row-major reinterpretations (no transpose / relayout of the big operand).
    logits_iv = logits.reshape(r, 2 * _LANES)                  # (R, 256) interleaved
    target_2d = target.astype(jnp.int32).reshape(r, _LANES)    # (R, 128) compact

    # Block rows: as large as VMEM comfortably allows (multi-MiB per step),
    # a multiple of the sublane granularity, never larger than the array.
    tr = min(int(block_rows), r)
    tr = max((tr // sub) * sub, min(r, sub))
    grid = -(-r // tr)

    n_valid = jnp.array([n], dtype=jnp.int32)
    lp = log_prior.astype(jnp.float32)
    dlp = (lp[1] - lp[0]).reshape(1)

    partials = pl.pallas_call(
        _loss_kernel,
        out_shape=jax.ShapeDtypeStruct((grid, 8, _LANES), jnp.float32),
        grid=(grid,),
        in_specs=[
            pl.BlockSpec(memory_space=pltpu.SMEM),                # n_valid scalar
            pl.BlockSpec(memory_space=pltpu.SMEM),                # lp1 - lp0 scalar
            pl.BlockSpec((tr, 2 * _LANES), lambda i: (i, 0)),     # logits tile
            pl.BlockSpec((tr, _LANES), lambda i: (i, 0)),         # target tile
        ],
        out_specs=pl.BlockSpec((1, 8, _LANES), lambda i: (i, 0, 0)),
        compiler_params=pltpu.CompilerParams(
            dimension_semantics=("parallel",),      # per-tile partials -> megacore OK
            vmem_limit_bytes=48 * 1024 * 1024,      # fits double-buffered 6 MiB tiles
        ),
    )(n_valid, dlp, logits_iv, target_2d)

    # Tiny epilogue in plain JAX: sum per-tile partials, take the mean.
    return jnp.sum(partials[:, 0, 0]) / jnp.float32(n)


def _reference_loss(logits, target, log_prior):
    y = logits.astype(jnp.float32) + log_prior.astype(jnp.float32)[None, :]
    logp = jax.nn.log_softmax(y, axis=-1)
    picked = jnp.take_along_axis(logp, target[:, None].astype(jnp.int32), axis=-1)
    return -jnp.mean(picked)


if __name__ == "__main__":
    log_prior = jnp.asarray(np.log(np.asarray(_PRIOR)), dtype=jnp.float32)

    key = jax.random.PRNGKey(0)
    k1, k2, k3, k4, k5, k6 = jax.random.split(key, 6)

    # 1) tiny batch: single tile, heavy tail masking.
    n1 = 8
    logits1 = jax.random.normal(k1, (n1, 2), dtype=jnp.float32)
    target1 = jax.random.randint(k2, (n1,), 0, 2, dtype=jnp.int32)
    out1 = logits_loss(logits1, target1, log_prior)
    jax.block_until_ready(out1)
    ref1 = _reference_loss(logits1, target1, log_prior)
    np.testing.assert_allclose(np.asarray(out1), np.asarray(ref1), rtol=1e-4, atol=1e-4)

    # 2) multi-tile grid with a ragged tail (interior unmasked tiles, last-tile
    #    masking, per-tile partial-sum output).
    n2 = 2500
    logits2 = jax.random.normal(k3, (n2, 2), dtype=jnp.float32)
    target2 = jax.random.randint(k4, (n2,), 0, 2, dtype=jnp.int32)
    out2 = logits_loss(logits2, target2, log_prior, block_rows=8)
    jax.block_until_ready(out2)
    ref2 = _reference_loss(logits2, target2, log_prior)
    np.testing.assert_allclose(np.asarray(out2), np.asarray(ref2), rtol=1e-4, atol=1e-4)

    # 3) bf16 logits (dtype-slimmed streaming; kernel upcasts internally).
    n3 = 2048
    logits3 = jax.random.normal(k5, (n3, 2), dtype=jnp.float32).astype(jnp.bfloat16)
    target3 = jax.random.randint(k6, (n3,), 0, 2, dtype=jnp.int32)
    out3 = logits_loss(logits3, target3, log_prior, block_rows=16)
    jax.block_until_ready(out3)
    ref3 = _reference_loss(logits3.astype(jnp.float32), target3, log_prior)
    np.testing.assert_allclose(np.asarray(out3), np.asarray(ref3), rtol=2e-4, atol=2e-4)

    print("KERNEL_OK")
</pallas_src>

<mosaic_0001>
module attributes {stable_mosaic.version = 11 : i64} {
  func.func @_loss_kernel(%arg0: i32, %arg1: memref<1xi32, #tpu.memory_space<smem>>, %arg2: memref<1xf32, #tpu.memory_space<smem>>, %arg3: memref<1x256xf32, #tpu.memory_space<vmem>>, %arg4: memref<1x128xi32, #tpu.memory_space<vmem>>, %arg5: memref<1x8x128xf32, #tpu.memory_space<vmem>>) attributes {dimension_semantics = [#tpu.dimension_semantics<parallel>], iteration_bounds = array<i64: 1>, scalar_prefetch = 0 : i64, scratch_operands = 0 : i64, tpu.core_type = #tpu.core_type<tc>, window_params = [{transform_indices = @transform_0, window_bounds = array<i64: 1>}, {transform_indices = @transform_1, window_bounds = array<i64: 1>}, {transform_indices = @transform_2, window_bounds = array<i64: 1, 256>}, {transform_indices = @transform_3, window_bounds = array<i64: 1, 128>}, {transform_indices = @transform_4, window_bounds = array<i64: 1, 8, 128>}]} {
    %c0 = arith.constant 0 : index
    %c0_0 = arith.constant 0 : index
    %0 = vector.load %arg3[%c0, %c0_0] : memref<1x256xf32, #tpu.memory_space<vmem>>, vector<1x256xf32>
    %c0_1 = arith.constant 0 : index
    %c0_2 = arith.constant 0 : index
    %1 = vector.load %arg4[%c0_1, %c0_2] : memref<1x128xi32, #tpu.memory_space<vmem>>, vector<1x128xi32>
    %2 = tpu.iota {dimensions = array<i32: 0>} : vector<256x128xi32>
    %3 = tpu.iota {dimensions = array<i32: 1>} : vector<256x128xi32>
    %c2_i32 = arith.constant 2 : i32
    %4 = vector.broadcast %c2_i32 : i32 to vector<256x128xi32>
    %5 = arith.muli %4, %3 : vector<256x128xi32>
    %6 = arith.cmpi eq, %2, %5 : vector<256x128xi32>
    %c2_i32_3 = arith.constant 2 : i32
    %7 = vector.broadcast %c2_i32_3 : i32 to vector<256x128xi32>
    %8 = arith.muli %7, %3 : vector<256x128xi32>
    %c1_i32 = arith.constant 1 : i32
    %9 = vector.broadcast %c1_i32 : i32 to vector<256x128xi32>
    %10 = arith.addi %8, %9 : vector<256x128xi32>
    %11 = arith.cmpi eq, %2, %10 : vector<256x128xi32>
    %cst = arith.constant 1.000000e+00 : f32
    %cst_4 = arith.constant 0.000000e+00 : f32
    %12 = vector.broadcast %cst : f32 to vector<256x128xf32>
    %13 = vector.broadcast %cst_4 : f32 to vector<256x128xf32>
    %14 = arith.select %11, %12, %13 : vector<256x128xi1>, vector<256x128xf32>
    %cst_5 = arith.constant -1.000000e+00 : f32
    %15 = vector.broadcast %cst_5 : f32 to vector<256x128xf32>
    %16 = arith.select %6, %15, %14 : vector<256x128xi1>, vector<256x128xf32>
    %cst_6 = arith.constant dense<0.000000e+00> : vector<1x128xf32>
    %17 = tpu.matmul %0, %16, %cst_6 {dimension_numbers = #tpu.dot_dimension_numbers<[1], [0], [0], [1], [0, 0, 1, 1], [], []>, precision = #tpu.contract_precision<fp32>} : vector<1x256xf32>, vector<256x128xf32>, vector<1x128xf32> -> vector<1x128xf32>
    %c0_7 = arith.constant 0 : index
    %18 = memref.load %arg2[%c0_7] : memref<1xf32, #tpu.memory_space<smem>>
    %19 = vector.broadcast %18 : f32 to vector<1x128xf32>
    %20 = arith.addf %17, %19 : vector<1x128xf32>
    %c0_i32 = arith.constant 0 : i32
    %21 = vector.broadcast %c0_i32 : i32 to vector<1x128xi32>
    %22 = arith.cmpi eq, %1, %21 : vector<1x128xi32>
    %cst_8 = arith.constant 0.000000e+00 : f32
    %23 = vector.broadcast %cst_8 : f32 to vector<1x128xf32>
    %24 = arith.subf %23, %20 : vector<1x128xf32>
    %25 = arith.select %22, %20, %24 : vector<1x128xi1>, vector<1x128xf32>
    %cst_9 = arith.constant 0.000000e+00 : f32
    %26 = vector.broadcast %cst_9 : f32 to vector<1x128xf32>
    %27 = arith.maximumf %25, %26 : vector<1x128xf32>
    %28 = math.absf %20 : vector<1x128xf32>
    %cst_10 = arith.constant 0.000000e+00 : f32
    %29 = vector.broadcast %cst_10 : f32 to vector<1x128xf32>
    %30 = arith.subf %29, %28 : vector<1x128xf32>
    %31 = math.exp %30 : vector<1x128xf32>
    %cst_11 = arith.constant 1.000000e+00 : f32
    %32 = vector.broadcast %cst_11 : f32 to vector<1x128xf32>
    %33 = arith.addf %32, %31 : vector<1x128xf32>
    %34 = math.log %33 : vector<1x128xf32>
    %35 = arith.addf %27, %34 : vector<1x128xf32>
    %c0_i32_12 = arith.constant 0 : i32
    %36 = arith.cmpi slt, %arg0, %c0_i32_12 : i32
    %37 = arith.extui %36 : i1 to i32
    %c0_i32_13 = arith.constant 0 : i32
    %38 = arith.cmpi ne, %37, %c0_i32_13 : i32
    scf.if %38 {
      %42 = vector.shape_cast %35 : vector<1x128xf32> to vector<1x1x128xf32>
      %cst_16 = arith.constant dense<0.000000e+00> : vector<1xf32>
      %43 = vector.multi_reduction <add>, %42, %cst_16 [1, 2] : vector<1x1x128xf32> to vector<1xf32>
      %44 = vector.shape_cast %43 : vector<1xf32> to vector<1x1x1xf32>
      %45 = vector.extract %44[0, 0, 0] : f32 from vector<1x1x1xf32>
      %46 = vector.broadcast %45 : f32 to vector<1x8x128xf32>
      %c0_17 = arith.constant 0 : index
      %c0_18 = arith.constant 0 : index
      %c0_19 = arith.constant 0 : index
      %47 = vector.load %arg5[%c0_17, %c0_18, %c0_19] : memref<1x8x128xf32, #tpu.memory_space<vmem>>, vector<1x8x128xf32>
      tpu.vector_store %arg5[%c0_17, %c0_18, %c0_19], %46 {strides = array<i32>} : memref<1x8x128xf32, #tpu.memory_space<vmem>>, vector<1x8x128xf32>,
    } else {
    }
    %c0_i32_14 = arith.constant 0 : i32
    %39 = arith.cmpi eq, %arg0, %c0_i32_14 : i32
    %40 = arith.extui %39 : i1 to i32
    %c0_i32_15 = arith.constant 0 : i32
    %41 = arith.cmpi ne, %40, %c0_i32_15 : i32
    scf.if %41 {
      %42 = tpu.iota {dimensions = array<i32: 0>} : vector<1x128xi32>
      %43 = tpu.iota {dimensions = array<i32: 1>} : vector<1x128xi32>
      %c1_i32_16 = arith.constant 1 : i32
      %44 = arith.muli %arg0, %c1_i32_16 : i32
      %45 = vector.broadcast %44 : i32 to vector<1x128xi32>
      %46 = arith.addi %45, %42 : vector<1x128xi32>
      %c128_i32 = arith.constant 128 : i32
      %47 = vector.broadcast %c128_i32 : i32 to vector<1x128xi32>
      %48 = arith.muli %46, %47 : vector<1x128xi32>
      %49 = arith.addi %48, %43 : vector<1x128xi32>
      %c0_17 = arith.constant 0 : index
      %50 = memref.load %arg1[%c0_17] : memref<1xi32, #tpu.memory_space<smem>>
      %51 = vector.broadcast %50 : i32 to vector<1x128xi32>
      %52 = arith.cmpi slt, %49, %51 : vector<1x128xi32>
      %cst_18 = arith.constant 0.000000e+00 : f32
      %53 = vector.broadcast %cst_18 : f32 to vector<1x128xf32>
      %54 = arith.select %52, %35, %53 : vector<1x128xi1>, vector<1x128xf32>
      %55 = vector.shape_cast %54 : vector<1x128xf32> to vector<1x1x128xf32>
      %cst_19 = arith.constant dense<0.000000e+00> : vector<1xf32>
      %56 = vector.multi_reduction <add>, %55, %cst_19 [1, 2] : vector<1x1x128xf32> to vector<1xf32>
      %57 = vector.shape_cast %56 : vector<1xf32> to vector<1x1x1xf32>
      %58 = vector.extract %57[0, 0, 0] : f32 from vector<1x1x1xf32>
      %59 = vector.broadcast %58 : f32 to vector<1x8x128xf32>
      %c0_20 = arith.constant 0 : index
      %c0_21 = arith.constant 0 : index
      %c0_22 = arith.constant 0 : index
      %60 = vector.load %arg5[%c0_20, %c0_21, %c0_22] : memref<1x8x128xf32, #tpu.memory_space<vmem>>, vector<1x8x128xf32>
      tpu.vector_store %arg5[%c0_20, %c0_21, %c0_22], %59 {strides = array<i32>} : memref<1x8x128xf32, #tpu.memory_space<vmem>>, vector<1x8x128xf32>,
    } else {
    }
    return
  }
  func.func @transform_0(%arg0: i32) -> i32 {
    %c0_i32 = arith.constant 0 : i32
    %c0_i32_0 = arith.constant 0 : i32
    return %c0_i32 : i32
  }
  func.func @transform_1(%arg0: i32) -> i32 {
    %c0_i32 = arith.constant 0 : i32
    %c0_i32_0 = arith.constant 0 : i32
    return %c0_i32 : i32
  }
  func.func @transform_2(%arg0: i32) -> (i32, i32) {
    %c0_i32 = arith.constant 0 : i32
    %c0_i32_0 = arith.constant 0 : i32
    return %arg0, %c0_i32 : i32, i32
  }
  func.func @transform_3(%arg0: i32) -> (i32, i32) {
    %c0_i32 = arith.constant 0 : i32
    %c0_i32_0 = arith.constant 0 : i32
    return %arg0, %c0_i32 : i32, i32
  }
  func.func @transform_4(%arg0: i32) -> (i32, i32, i32) {
    %c0_i32 = arith.constant 0 : i32
    %c0_i32_0 = arith.constant 0 : i32
    %c0_i32_1 = arith.constant 0 : i32
    return %arg0, %c0_i32, %c0_i32_0 : i32, i32, i32
  }
}

</mosaic_0001>

<llo_original>
// kernel: tpu_custom_call.1
$region0: #{tpu_custom_call.1}
  #allocation0 [shape = 'u32[]', space=smem, size = 0x4, offset = 0x4, fixed_abs, tag = 'smem constant byte address 0x4 - core index']
  #allocation1 [shape = 'u32[72,128]{1,0:T(1,128)}', space=vmem, size = 0x9000, scoped, tag = 'internal scratch']
  #allocation2 [shape = 's32[1]{0:T(128)S(6)}', space=smem, size = 0x200, scoped, tag = 'scoped memory for tpu_custom_call.1']
  #allocation3 [shape = 'f32[1]{0:T(128)S(6)}', space=smem, size = 0x200, scoped, tag = 'scoped memory for tpu_custom_call.1']
  %s0 = inlined_call_operand.<no memory space> [shape: s32[1], index: 0, kind: input, shape index: {}]
  %s1 = inlined_call_operand.<no memory space> [shape: f32[1], index: 1, kind: input, shape index: {}]
  %s2 = inlined_call_operand.vmem [shape: f32[1,256], index: 2, kind: input, shape index: {}]
  %s3 = inlined_call_operand.vmem [shape: s32[1,128], index: 3, kind: input, shape index: {}]
  %s4 = inlined_call_operand.hbm [shape: f32[1,8,128], index: 4, kind: output, shape index: {}]
  %s5 = sld [smem:[#allocation0]]
  $region34: #{tpu_custom_call.1} parent=0
    _
  %s7 = ssub.s32 1, %s5
  %s8 = scalar_select 0, %s7, %s5
  %9 = sst [smem:[#allocation2]] %s0
  %10 = sst [smem:[#allocation3]] %s1
  $region1: #{tpu_custom_call.1} parent=0
    #allocation4 [shape = 'u8[4096]{0}', space=vmem, size = 0x1000, scoped, tag = 'output window, operand 0, single buffered']
    #allocation5 [shape = 's32[1]{0}', space=sflag, size = 0x4, scoped, tag = 'scoped memory for tpu_custom_call.1']
    %11 = vsyncpa [#allocation5], 0
    // Predicated region
    $region2: #{tpu_custom_call.1} parent=1 // pred_check
      _
    $region3: #{tpu_custom_call.1} parent=1 // pred_check_branch
      %13 = sbr.rel (0) target = $region5
    $region4: #{tpu_custom_call.1} parent=1 // pred_region
      _
    $region5: #{tpu_custom_call.1} parent=1 // pred_fallthru
      _
    // Predicated region
    $region6: #{tpu_custom_call.1} parent=1 // pred_check
      _
    $region7: #{tpu_custom_call.1} parent=1 // pred_check_branch
      %15 = sbr.rel (0) target = $region9
    $region8: #{tpu_custom_call.1} parent=1 // pred_region
      _
    $region9: #{tpu_custom_call.1} parent=1 // pred_fallthru
      _
    // Predicated region
    $region10: #{tpu_custom_call.1} parent=1 // pred_check
      _
    $region11: #{tpu_custom_call.1} parent=1 // pred_check_branch
      %17 = sbr.rel (0) target = $region13
    $region12: #{tpu_custom_call.1} parent=1 // pred_region
      _
    $region13: #{tpu_custom_call.1} parent=1 // pred_fallthru
      _
    // Predicated region
    $region14: #{tpu_custom_call.1} parent=1 // pred_check
      _
    $region15: #{tpu_custom_call.1} parent=1 // pred_check_branch
      %19 = sbr.rel (0) target = $region17
    $region16: #{tpu_custom_call.1} parent=1 // pred_region
      _
    $region17: #{tpu_custom_call.1} parent=1 // pred_fallthru
      _
    %v20 = vld [vmem:[%s2] sm:$0x3]
    %v21 = vld [vmem:[%s3] sm:$0x1]
    %v22 = vlaneseq
    %v23 = vshrl.u32 %v22, 7
    %v24 = vadd.s32 %v23, 8
    %v25 = vadd.s32 %v23, 16
    %v26 = vadd.s32 %v23, 24
    %v27 = vadd.s32 %v23, 32
    %v28 = vadd.s32 %v23, 40
    %v29 = vadd.s32 %v23, 48
    %v30 = vadd.s32 %v23, 56
    %v31 = vadd.s32 %v23, 64
    %v32 = vadd.s32 %v23, 72
    %v33 = vadd.s32 %v23, 80
    %v34 = vadd.s32 %v23, 88
    %v35 = vadd.s32 %v23, 96
    %v36 = vadd.s32 %v23, 104
    %v37 = vadd.s32 %v23, 112
    %v38 = vadd.s32 %v23, 120
    %v39 = vadd.s32 %v23, 128
    %v40 = vadd.s32 %v23, 136
    %v41 = vadd.s32 %v23, 144
    %v42 = vadd.s32 %v23, 152
    %v43 = vadd.s32 %v23, 160
    %v44 = vadd.s32 %v23, 168
    %v45 = vadd.s32 %v23, 176
    %v46 = vadd.s32 %v23, 184
    %v47 = vadd.s32 %v23, 192
    %v48 = vadd.s32 %v23, 200
    %v49 = vadd.s32 %v23, 208
    %v50 = vadd.s32 %v23, 216
    %v51 = vadd.s32 %v23, 224
    %v52 = vadd.s32 %v23, 232
    %v53 = vadd.s32 %v23, 240
    %v54 = vadd.s32 %v23, 248
    %v55 = vlaneseq
    %v56 = vand.u32 %v55, 127
    %v57 = vmul.u32 %v56, 2
    %vm58 = vcmp.eq.s32.totalorder %v23, %v57
    %vm59 = vcmp.eq.s32.totalorder %v24, %v57
    %vm60 = vcmp.eq.s32.totalorder %v25, %v57
    %vm61 = vcmp.eq.s32.totalorder %v26, %v57
    %vm62 = vcmp.eq.s32.totalorder %v27, %v57
    %vm63 = vcmp.eq.s32.totalorder %v28, %v57
    %vm64 = vcmp.eq.s32.totalorder %v29, %v57
    %vm65 = vcmp.eq.s32.totalorder %v30, %v57
    %vm66 = vcmp.eq.s32.totalorder %v31, %v57
    %vm67 = vcmp.eq.s32.totalorder %v32, %v57
    %vm68 = vcmp.eq.s32.totalorder %v33, %v57
    %vm69 = vcmp.eq.s32.totalorder %v34, %v57
    %vm70 = vcmp.eq.s32.totalorder %v35, %v57
    %vm71 = vcmp.eq.s32.totalorder %v36, %v57
    %vm72 = vcmp.eq.s32.totalorder %v37, %v57
    %vm73 = vcmp.eq.s32.totalorder %v38, %v57
    %vm74 = vcmp.eq.s32.totalorder %v39, %v57
    %vm75 = vcmp.eq.s32.totalorder %v40, %v57
    %vm76 = vcmp.eq.s32.totalorder %v41, %v57
    %vm77 = vcmp.eq.s32.totalorder %v42, %v57
    %vm78 = vcmp.eq.s32.totalorder %v43, %v57
    %vm79 = vcmp.eq.s32.totalorder %v44, %v57
    %vm80 = vcmp.eq.s32.totalorder %v45, %v57
    %vm81 = vcmp.eq.s32.totalorder %v46, %v57
    %vm82 = vcmp.eq.s32.totalorder %v47, %v57
    %vm83 = vcmp.eq.s32.totalorder %v48, %v57
    %vm84 = vcmp.eq.s32.totalorder %v49, %v57
    %vm85 = vcmp.eq.s32.totalorder %v50, %v57
    %vm86 = vcmp.eq.s32.totalorder %v51, %v57
    %vm87 = vcmp.eq.s32.totalorder %v52, %v57
    %vm88 = vcmp.eq.s32.totalorder %v53, %v57
    %vm89 = vcmp.eq.s32.totalorder %v54, %v57
    %v90 = vadd.s32 %v57, 1
    %vm91 = vcmp.eq.s32.totalorder %v23, %v90
    %vm92 = vcmp.eq.s32.totalorder %v24, %v90
    %vm93 = vcmp.eq.s32.totalorder %v25, %v90
    %vm94 = vcmp.eq.s32.totalorder %v26, %v90
    %vm95 = vcmp.eq.s32.totalorder %v27, %v90
    %vm96 = vcmp.eq.s32.totalorder %v28, %v90
    %vm97 = vcmp.eq.s32.totalorder %v29, %v90
    %vm98 = vcmp.eq.s32.totalorder %v30, %v90
    %vm99 = vcmp.eq.s32.totalorder %v31, %v90
    %vm100 = vcmp.eq.s32.totalorder %v32, %v90
    %vm101 = vcmp.eq.s32.totalorder %v33, %v90
    %vm102 = vcmp.eq.s32.totalorder %v34, %v90
    %vm103 = vcmp.eq.s32.totalorder %v35, %v90
    %vm104 = vcmp.eq.s32.totalorder %v36, %v90
    %vm105 = vcmp.eq.s32.totalorder %v37, %v90
    %vm106 = vcmp.eq.s32.totalorder %v38, %v90
    %vm107 = vcmp.eq.s32.totalorder %v39, %v90
    %vm108 = vcmp.eq.s32.totalorder %v40, %v90
    %vm109 = vcmp.eq.s32.totalorder %v41, %v90
    %vm110 = vcmp.eq.s32.totalorder %v42, %v90
    %vm111 = vcmp.eq.s32.totalorder %v43, %v90
    %vm112 = vcmp.eq.s32.totalorder %v44, %v90
    %vm113 = vcmp.eq.s32.totalorder %v45, %v90
    %vm114 = vcmp.eq.s32.totalorder %v46, %v90
    %vm115 = vcmp.eq.s32.totalorder %v47, %v90
    %vm116 = vcmp.eq.s32.totalorder %v48, %v90
    %vm117 = vcmp.eq.s32.totalorder %v49, %v90
    %vm118 = vcmp.eq.s32.totalorder %v50, %v90
    %vm119 = vcmp.eq.s32.totalorder %v51, %v90
    %vm120 = vcmp.eq.s32.totalorder %v52, %v90
    %vm121 = vcmp.eq.s32.totalorder %v53, %v90
    %vm122 = vcmp.eq.s32.totalorder %v54, %v90
    %v123 = vsel %vm91, 1.0, 0.0
    %v124 = vsel %vm92, 1.0, 0.0
    %v125 = vsel %vm93, 1.0, 0.0
    %v126 = vsel %vm94, 1.0, 0.0
    %v127 = vsel %vm95, 1.0, 0.0
    %v128 = vsel %vm96, 1.0, 0.0
    %v129 = vsel %vm97, 1.0, 0.0
    %v130 = vsel %vm98, 1.0, 0.0
    %v131 = vsel %vm99, 1.0, 0.0
    %v132 = vsel %vm100, 1.0, 0.0
    %v133 = vsel %vm101, 1.0, 0.0
    %v134 = vsel %vm102, 1.0, 0.0
    %v135 = vsel %vm103, 1.0, 0.0
    %v136 = vsel %vm104, 1.0, 0.0
    %v137 = vsel %vm105, 1.0, 0.0
    %v138 = vsel %vm106, 1.0, 0.0
    %v139 = vsel %vm107, 1.0, 0.0
    %v140 = vsel %vm108, 1.0, 0.0
    %v141 = vsel %vm109, 1.0, 0.0
    %v142 = vsel %vm110, 1.0, 0.0
    %v143 = vsel %vm111, 1.0, 0.0
    %v144 = vsel %vm112, 1.0, 0.0
    %v145 = vsel %vm113, 1.0, 0.0
    %v146 = vsel %vm114, 1.0, 0.0
    %v147 = vsel %vm115, 1.0, 0.0
    %v148 = vsel %vm116, 1.0, 0.0
    %v149 = vsel %vm117, 1.0, 0.0
    %v150 = vsel %vm118, 1.0, 0.0
    %v151 = vsel %vm119, 1.0, 0.0
    %v152 = vsel %vm120, 1.0, 0.0
    %v153 = vsel %vm121, 1.0, 0.0
    %v154 = vsel %vm122, 1.0, 0.0
    %v155 = vsel %vm58, -1.0, %v123
    %v156 = vsel %vm59, -1.0, %v124
    %v157 = vsel %vm60, -1.0, %v125
    %v158 = vsel %vm61, -1.0, %v126
    %v159 = vsel %vm62, -1.0, %v127
    %v160 = vsel %vm63, -1.0, %v128
    %v161 = vsel %vm64, -1.0, %v129
    %v162 = vsel %vm65, -1.0, %v130
    %v163 = vsel %vm66, -1.0, %v131
    %v164 = vsel %vm67, -1.0, %v132
    %v165 = vsel %vm68, -1.0, %v133
    %v166 = vsel %vm69, -1.0, %v134
    %v167 = vsel %vm70, -1.0, %v135
    %v168 = vsel %vm71, -1.0, %v136
    %v169 = vsel %vm72, -1.0, %v137
    %v170 = vsel %vm73, -1.0, %v138
    %v171 = vsel %vm74, -1.0, %v139
    %v172 = vsel %vm75, -1.0, %v140
    %v173 = vsel %vm76, -1.0, %v141
    %v174 = vsel %vm77, -1.0, %v142
    %v175 = vsel %vm78, -1.0, %v143
    %v176 = vsel %vm79, -1.0, %v144
    %v177 = vsel %vm80, -1.0, %v145
    %v178 = vsel %vm81, -1.0, %v146
    %v179 = vsel %vm82, -1.0, %v147
    %v180 = vsel %vm83, -1.0, %v148
    %v181 = vsel %vm84, -1.0, %v149
    %v182 = vsel %vm85, -1.0, %v150
    %v183 = vsel %vm86, -1.0, %v151
    %v184 = vsel %vm87, -1.0, %v152
    %v185 = vsel %vm88, -1.0, %v153
    %v186 = vsel %vm89, -1.0, %v154
    %s187 = sld [smem:[#allocation3]]
    %v188 = vstv %s187
    %v190 = vperm.slane %v20, 0
    %v191 = vperm.slane %v20, 1
    %194 = vmatpush.msra.mxu0 %v170
    %195 = vmatpush.msra.mxu0 %v169
    %196 = vmatpush.msra.mxu0 %v168
    %197 = vmatpush.msra.mxu0 %v167
    %198 = vmatpush.msra.mxu0 %v166
    %199 = vmatpush.msra.mxu0 %v165
    %200 = vmatpush.msra.mxu0 %v164
    %201 = vmatpush.msra.mxu0 %v163
    %202 = vmatpush.msra.mxu0 %v162
    %203 = vmatpush.msra.mxu0 %v161
    %204 = vmatpush.msra.mxu0 %v160
    %205 = vmatpush.msra.mxu0 %v159
    %206 = vmatpush.msra.mxu0 %v158
    %207 = vmatpush.msra.mxu0 %v157
    %208 = vmatpush.msra.mxu0 %v156
    %209 = vmatpush.msra.mxu0 %v155
    %v210 = vand.u32 %v190, 4294901760
    %v211 = vsub.f32 %v190, %v210
    %v212 = vand.u32 %v211, 4294901760
    %v213 = vsub.f32 %v211, %v212
    %v214 = vand.u32 %v213, 4294901760
    %215 = vmatmul.f32.gmra.mxu0 %v214
    %v216 = vpop.f32.mrf.mxu0
    %v217 = vadd.f32 %v188, %v216
    %218 = vdwg.mxu0
    %v219 = vsub.f32 %v170, %v170
    %v220 = vand.u32 %v219, 4294901760
    %v221 = vsub.f32 %v219, %v220
    %v222 = vand.u32 %v221, 4294901760
    %223 = vmatpush.msra.mxu0 %v222
    %v224 = vsub.f32 %v169, %v169
    %v225 = vand.u32 %v224, 4294901760
    %v226 = vsub.f32 %v224, %v225
    %v227 = vand.u32 %v226, 4294901760
    %228 = vmatpush.msra.mxu0 %v227
    %v229 = vsub.f32 %v168, %v168
    %v230 = vand.u32 %v229, 4294901760
    %v231 = vsub.f32 %v229, %v230
    %v232 = vand.u32 %v231, 4294901760
    %233 = vmatpush.msra.mxu0 %v232
    %v234 = vsub.f32 %v167, %v167
    %v235 = vand.u32 %v234, 4294901760
    %v236 = vsub.f32 %v234, %v235
    %v237 = vand.u32 %v236, 4294901760
    %238 = vmatpush.msra.mxu0 %v237
    %v239 = vsub.f32 %v166, %v166
    %v240 = vand.u32 %v239, 4294901760
    %v241 = vsub.f32 %v239, %v240
    %v242 = vand.u32 %v241, 4294901760
    %243 = vmatpush.msra.mxu0 %v242
    %v244 = vsub.f32 %v165, %v165
    %v245 = vand.u32 %v244, 4294901760
    %v246 = vsub.f32 %v244, %v245
    %v247 = vand.u32 %v246, 4294901760
    %248 = vmatpush.msra.mxu0 %v247
    %v249 = vsub.f32 %v164, %v164
    %v250 = vand.u32 %v249, 4294901760
    %v251 = vsub.f32 %v249, %v250
    %v252 = vand.u32 %v251, 4294901760
    %253 = vmatpush.msra.mxu0 %v252
    %v254 = vsub.f32 %v163, %v163
    %v255 = vand.u32 %v254, 4294901760
    %v256 = vsub.f32 %v254, %v255
    %v257 = vand.u32 %v256, 4294901760
    %258 = vmatpush.msra.mxu0 %v257
    %v259 = vsub.f32 %v162, %v162
    %v260 = vand.u32 %v259, 4294901760
    %v261 = vsub.f32 %v259, %v260
    %v262 = vand.u32 %v261, 4294901760
    %263 = vmatpush.msra.mxu0 %v262
    %v264 = vsub.f32 %v161, %v161
    %v265 = vand.u32 %v264, 4294901760
    %v266 = vsub.f32 %v264, %v265
    %v267 = vand.u32 %v266, 4294901760
    %268 = vmatpush.msra.mxu0 %v267
    %v269 = vsub.f32 %v160, %v160
    %v270 = vand.u32 %v269, 4294901760
    %v271 = vsub.f32 %v269, %v270
    %v272 = vand.u32 %v271, 4294901760
    %273 = vmatpush.msra.mxu0 %v272
    %v274 = vsub.f32 %v159, %v159
    %v275 = vand.u32 %v274, 4294901760
    %v276 = vsub.f32 %v274, %v275
    %v277 = vand.u32 %v276, 4294901760
    %278 = vmatpush.msra.mxu0 %v277
    %v279 = vsub.f32 %v158, %v158
    %v280 = vand.u32 %v279, 4294901760
    %v281 = vsub.f32 %v279, %v280
    %v282 = vand.u32 %v281, 4294901760
    %283 = vmatpush.msra.mxu0 %v282
    %v284 = vsub.f32 %v157, %v157
    %v285 = vand.u32 %v284, 4294901760
    %v286 = vsub.f32 %v284, %v285
    %v287 = vand.u32 %v286, 4294901760
    %288 = vmatpush.msra.mxu0 %v287
    %v289 = vsub.f32 %v156, %v156
    %v290 = vand.u32 %v289, 4294901760
    %v291 = vsub.f32 %v289, %v290
    %v292 = vand.u32 %v291, 4294901760
    %293 = vmatpush.msra.mxu0 %v292
    %v294 = vsub.f32 %v155, %v155
    %v295 = vand.u32 %v294, 4294901760
    %v296 = vsub.f32 %v294, %v295
    %v297 = vand.u32 %v296, 4294901760
    %298 = vmatpush.msra.mxu0 %v297
    %v299 = vand.u32 %v190, 4294901760
    %300 = vmatmul.f32.gmra.mxu0 %v299
    %v301 = vpop.f32.mrf.mxu0
    %v302 = vadd.f32 %v217, %v301
    %303 = vdwg.mxu0
    %v304 = vsub.f32 %v170, %v170
    %305 = vmatpush.msra.mxu0 %v304
    %v306 = vsub.f32 %v169, %v169
    %307 = vmatpush.msra.mxu0 %v306
    %v308 = vsub.f32 %v168, %v168
    %309 = vmatpush.msra.mxu0 %v308
    %v310 = vsub.f32 %v167, %v167
    %311 = vmatpush.msra.mxu0 %v310
    %v312 = vsub.f32 %v166, %v166
    %313 = vmatpush.msra.mxu0 %v312
    %v314 = vsub.f32 %v165, %v165
    %315 = vmatpush.msra.mxu0 %v314
    %v316 = vsub.f32 %v164, %v164
    %317 = vmatpush.msra.mxu0 %v316
    %v318 = vsub.f32 %v163, %v163
    %319 = vmatpush.msra.mxu0 %v318
    %v320 = vsub.f32 %v162, %v162
    %321 = vmatpush.msra.mxu0 %v320
    %v322 = vsub.f32 %v161, %v161
    %323 = vmatpush.msra.mxu0 %v322
    %v324 = vsub.f32 %v160, %v160
    %325 = vmatpush.msra.mxu0 %v324
    %v326 = vsub.f32 %v159, %v159
    %327 = vmatpush.msra.mxu0 %v326
    %v328 = vsub.f32 %v158, %v158
    %329 = vmatpush.msra.mxu0 %v328
    %v330 = vsub.f32 %v157, %v157
    %331 = vmatpush.msra.mxu0 %v330
    %v332 = vsub.f32 %v156, %v156
    %333 = vmatpush.msra.mxu0 %v332
    %v334 = vsub.f32 %v155, %v155
    %335 = vmatpush.msra.mxu0 %v334
    %v336 = vand.u32 %v190, 4294901760
    %v337 = vsub.f32 %v190, %v336
    %338 = vmatmul.f32.gmra.mxu0 %v337
    %v339 = vpop.f32.mrf.mxu0
    %v340 = vadd.f32 %v302, %v339
    %341 = vdwg.mxu0
    %342 = vmatpush.msra.mxu0 %v170
    %343 = vmatpush.msra.mxu0 %v169
    %344 = vmatpush.msra.mxu0 %v168
    %345 = vmatpush.msra.mxu0 %v167
    %346 = vmatpush.msra.mxu0 %v166
    %347 = vmatpush.msra.mxu0 %v165
    %348 = vmatpush.msra.mxu0 %v164
    %349 = vmatpush.msra.mxu0 %v163
    %350 = vmatpush.msra.mxu0 %v162
    %351 = vmatpush.msra.mxu0 %v161
    %352 = vmatpush.msra.mxu0 %v160
    %353 = vmatpush.msra.mxu0 %v159
    %354 = vmatpush.msra.mxu0 %v158
    %355 = vmatpush.msra.mxu0 %v157
    %356 = vmatpush.msra.mxu0 %v156
    %357 = vmatpush.msra.mxu0 %v155
    %v358 = vand.u32 %v190, 4294901760
    %v359 = vsub.f32 %v190, %v358
    %v360 = vand.u32 %v359, 4294901760
    %361 = vmatmul.f32.gmra.mxu0 %v360
    %v362 = vpop.f32.mrf.mxu0
    %v363 = vadd.f32 %v340, %v362
    %364 = vdwg.mxu0
    %v365 = vsub.f32 %v170, %v170
    %v366 = vand.u32 %v365, 4294901760
    %367 = vmatpush.msra.mxu0 %v366
    %v368 = vsub.f32 %v169, %v169
    %v369 = vand.u32 %v368, 4294901760
    %370 = vmatpush.msra.mxu0 %v369
    %v371 = vsub.f32 %v168, %v168
    %v372 = vand.u32 %v371, 4294901760
    %373 = vmatpush.msra.mxu0 %v372
    %v374 = vsub.f32 %v167, %v167
    %v375 = vand.u32 %v374, 4294901760
    %376 = vmatpush.msra.mxu0 %v375
    %v377 = vsub.f32 %v166, %v166
    %v378 = vand.u32 %v377, 4294901760
    %379 = vmatpush.msra.mxu0 %v378
    %v380 = vsub.f32 %v165, %v165
    %v381 = vand.u32 %v380, 4294901760
    %382 = vmatpush.msra.mxu0 %v381
    %v383 = vsub.f32 %v164, %v164
    %v384 = vand.u32 %v383, 4294901760
    %385 = vmatpush.msra.mxu0 %v384
    %v386 = vsub.f32 %v163, %v163
    %v387 = vand.u32 %v386, 4294901760
    %388 = vmatpush.msra.mxu0 %v387
    %v389 = vsub.f32 %v162, %v162
    %v390 = vand.u32 %v389, 4294901760
    %391 = vmatpush.msra.mxu0 %v390
    %v392 = vsub.f32 %v161, %v161
    %v393 = vand.u32 %v392, 4294901760
    %394 = vmatpush.msra.mxu0 %v393
    %v395 = vsub.f32 %v160, %v160
    %v396 = vand.u32 %v395, 4294901760
    %397 = vmatpush.msra.mxu0 %v396
    %v398 = vsub.f32 %v159, %v159
    %v399 = vand.u32 %v398, 4294901760
    %400 = vmatpush.msra.mxu0 %v399
    %v401 = vsub.f32 %v158, %v158
    %v402 = vand.u32 %v401, 4294901760
    %403 = vmatpush.msra.mxu0 %v402
    %v404 = vsub.f32 %v157, %v157
    %v405 = vand.u32 %v404, 4294901760
    %406 = vmatpush.msra.mxu0 %v405
    %v407 = vsub.f32 %v156, %v156
    %v408 = vand.u32 %v407, 4294901760
    %409 = vmatpush.msra.mxu0 %v408
    %v410 = vsub.f32 %v155, %v155
    %v411 = vand.u32 %v410, 4294901760
    %412 = vmatpush.msra.mxu0 %v411
    %v413 = vand.u32 %v190, 4294901760
    %414 = vmatmul.f32.gmra.mxu0 %v413
    %v415 = vpop.f32.mrf.mxu0
    %v416 = vadd.f32 %v363, %v415
    %417 = vdwg.mxu0
    %418 = vmatpush.msra.mxu0 %v170
    %419 = vmatpush.msra.mxu0 %v169
    %420 = vmatpush.msra.mxu0 %v168
    %421 = vmatpush.msra.mxu0 %v167
    %422 = vmatpush.msra.mxu0 %v166
    %423 = vmatpush.msra.mxu0 %v165
    %424 = vmatpush.msra.mxu0 %v164
    %425 = vmatpush.msra.mxu0 %v163
    %426 = vmatpush.msra.mxu0 %v162
    %427 = vmatpush.msra.mxu0 %v161
    %428 = vmatpush.msra.mxu0 %v160
    %429 = vmatpush.msra.mxu0 %v159
    %430 = vmatpush.msra.mxu0 %v158
    %431 = vmatpush.msra.mxu0 %v157
    %432 = vmatpush.msra.mxu0 %v156
    %433 = vmatpush.msra.mxu0 %v155
    %v434 = vand.u32 %v190, 4294901760
    %435 = vmatmul.f32.gmra.mxu0 %v434
    %v436 = vpop.f32.mrf.mxu0
    %v437 = vadd.f32 %v416, %v436
    %438 = vdwg.mxu0
    %439 = vmatpush.msra.mxu0 %v186
    %440 = vmatpush.msra.mxu0 %v185
    %441 = vmatpush.msra.mxu0 %v184
    %442 = vmatpush.msra.mxu0 %v183
    %443 = vmatpush.msra.mxu0 %v182
    %444 = vmatpush.msra.mxu0 %v181
    %445 = vmatpush.msra.mxu0 %v180
    %446 = vmatpush.msra.mxu0 %v179
    %447 = vmatpush.msra.mxu0 %v178
    %448 = vmatpush.msra.mxu0 %v177
    %449 = vmatpush.msra.mxu0 %v176
    %450 = vmatpush.msra.mxu0 %v175
    %451 = vmatpush.msra.mxu0 %v174
    %452 = vmatpush.msra.mxu0 %v173
    %453 = vmatpush.msra.mxu0 %v172
    %454 = vmatpush.msra.mxu0 %v171
    %v455 = vand.u32 %v191, 4294901760
    %v456 = vsub.f32 %v191, %v455
    %v457 = vand.u32 %v456, 4294901760
    %v458 = vsub.f32 %v456, %v457
    %v459 = vand.u32 %v458, 4294901760
    %460 = vmatmul.f32.gmra.mxu0 %v459
    %v461 = vpop.f32.mrf.mxu0
    %v462 = vadd.f32 %v437, %v461
    %463 = vdwg.mxu0
    %v464 = vsub.f32 %v186, %v186
    %v465 = vand.u32 %v464, 4294901760
    %v466 = vsub.f32 %v464, %v465
    %v467 = vand.u32 %v466, 4294901760
    %468 = vmatpush.msra.mxu0 %v467
    %v469 = vsub.f32 %v185, %v185
    %v470 = vand.u32 %v469, 4294901760
    %v471 = vsub.f32 %v469, %v470
    %v472 = vand.u32 %v471, 4294901760
    %473 = vmatpush.msra.mxu0 %v472
    %v474 = vsub.f32 %v184, %v184
    %v475 = vand.u32 %v474, 4294901760
    %v476 = vsub.f32 %v474, %v475
    %v477 = vand.u32 %v476, 4294901760
    %478 = vmatpush.msra.mxu0 %v477
    %v479 = vsub.f32 %v183, %v183
    %v480 = vand.u32 %v479, 4294901760
    %v481 = vsub.f32 %v479, %v480
    %v482 = vand.u32 %v481, 4294901760
    %483 = vmatpush.msra.mxu0 %v482
    %v484 = vsub.f32 %v182, %v182
    %v485 = vand.u32 %v484, 4294901760
    %v486 = vsub.f32 %v484, %v485
    %v487 = vand.u32 %v486, 4294901760
    %488 = vmatpush.msra.mxu0 %v487
    %v489 = vsub.f32 %v181, %v181
    %v490 = vand.u32 %v489, 4294901760
    %v491 = vsub.f32 %v489, %v490
    %v492 = vand.u32 %v491, 4294901760
    %493 = vmatpush.msra.mxu0 %v492
    %v494 = vsub.f32 %v180, %v180
    %v495 = vand.u32 %v494, 4294901760
    %v496 = vsub.f32 %v494, %v495
    %v497 = vand.u32 %v496, 4294901760
    %498 = vmatpush.msra.mxu0 %v497
    %v499 = vsub.f32 %v179, %v179
    %v500 = vand.u32 %v499, 4294901760
    %v501 = vsub.f32 %v499, %v500
    %v502 = vand.u32 %v501, 4294901760
    %503 = vmatpush.msra.mxu0 %v502
    %v504 = vsub.f32 %v178, %v178
    %v505 = vand.u32 %v504, 4294901760
    %v506 = vsub.f32 %v504, %v505
    %v507 = vand.u32 %v506, 4294901760
    %508 = vmatpush.msra.mxu0 %v507
    %v509 = vsub.f32 %v177, %v177
    %v510 = vand.u32 %v509, 4294901760
    %v511 = vsub.f32 %v509, %v510
    %v512 = vand.u32 %v511, 4294901760
    %513 = vmatpush.msra.mxu0 %v512
    %v514 = vsub.f32 %v176, %v176
    %v515 = vand.u32 %v514, 4294901760
    %v516 = vsub.f32 %v514, %v515
    %v517 = vand.u32 %v516, 4294901760
    %518 = vmatpush.msra.mxu0 %v517
    %v519 = vsub.f32 %v175, %v175
    %v520 = vand.u32 %v519, 4294901760
    %v521 = vsub.f32 %v519, %v520
    %v522 = vand.u32 %v521, 4294901760
    %523 = vmatpush.msra.mxu0 %v522
    %v524 = vsub.f32 %v174, %v174
    %v525 = vand.u32 %v524, 4294901760
    %v526 = vsub.f32 %v524, %v525
    %v527 = vand.u32 %v526, 4294901760
    %528 = vmatpush.msra.mxu0 %v527
    %v529 = vsub.f32 %v173, %v173
    %v530 = vand.u32 %v529, 4294901760
    %v531 = vsub.f32 %v529, %v530
    %v532 = vand.u32 %v531, 4294901760
    %533 = vmatpush.msra.mxu0 %v532
    %v534 = vsub.f32 %v172, %v172
    %v535 = vand.u32 %v534, 4294901760
    %v536 = vsub.f32 %v534, %v535
    %v537 = vand.u32 %v536, 4294901760
    %538 = vmatpush.msra.mxu0 %v537
    %v539 = vsub.f32 %v171, %v171
    %v540 = vand.u32 %v539, 4294901760
    %v541 = vsub.f32 %v539, %v540
    %v542 = vand.u32 %v541, 4294901760
    %543 = vmatpush.msra.mxu0 %v542
    %v544 = vand.u32 %v191, 4294901760
    %545 = vmatmul.f32.gmra.mxu0 %v544
    %v546 = vpop.f32.mrf.mxu0
    %v547 = vadd.f32 %v462, %v546
    %548 = vdwg.mxu0
    %v549 = vsub.f32 %v186, %v186
    %550 = vmatpush.msra.mxu0 %v549
    %v551 = vsub.f32 %v185, %v185
    %552 = vmatpush.msra.mxu0 %v551
    %v553 = vsub.f32 %v184, %v184
    %554 = vmatpush.msra.mxu0 %v553
    %v555 = vsub.f32 %v183, %v183
    %556 = vmatpush.msra.mxu0 %v555
    %v557 = vsub.f32 %v182, %v182
    %558 = vmatpush.msra.mxu0 %v557
    %v559 = vsub.f32 %v181, %v181
    %560 = vmatpush.msra.mxu0 %v559
    %v561 = vsub.f32 %v180, %v180
    %562 = vmatpush.msra.mxu0 %v561
    %v563 = vsub.f32 %v179, %v179
    %564 = vmatpush.msra.mxu0 %v563
    %v565 = vsub.f32 %v178, %v178
    %566 = vmatpush.msra.mxu0 %v565
    %v567 = vsub.f32 %v177, %v177
    %568 = vmatpush.msra.mxu0 %v567
    %v569 = vsub.f32 %v176, %v176
    %570 = vmatpush.msra.mxu0 %v569
    %v571 = vsub.f32 %v175, %v175
    %572 = vmatpush.msra.mxu0 %v571
    %v573 = vsub.f32 %v174, %v174
    %574 = vmatpush.msra.mxu0 %v573
    %v575 = vsub.f32 %v173, %v173
    %576 = vmatpush.msra.mxu0 %v575
    %v577 = vsub.f32 %v172, %v172
    %578 = vmatpush.msra.mxu0 %v577
    %v579 = vsub.f32 %v171, %v171
    %580 = vmatpush.msra.mxu0 %v579
    %v581 = vand.u32 %v191, 4294901760
    %v582 = vsub.f32 %v191, %v581
    %583 = vmatmul.f32.gmra.mxu0 %v582
    %v584 = vpop.f32.mrf.mxu0
    %v585 = vadd.f32 %v547, %v584
    %586 = vdwg.mxu0
    %587 = vmatpush.msra.mxu0 %v186
    %588 = vmatpush.msra.mxu0 %v185
    %589 = vmatpush.msra.mxu0 %v184
    %590 = vmatpush.msra.mxu0 %v183
    %591 = vmatpush.msra.mxu0 %v182
    %592 = vmatpush.msra.mxu0 %v181
    %593 = vmatpush.msra.mxu0 %v180
    %594 = vmatpush.msra.mxu0 %v179
    %595 = vmatpush.msra.mxu0 %v178
    %596 = vmatpush.msra.mxu0 %v177
    %597 = vmatpush.msra.mxu0 %v176
    %598 = vmatpush.msra.mxu0 %v175
    %599 = vmatpush.msra.mxu0 %v174
    %600 = vmatpush.msra.mxu0 %v173
    %601 = vmatpush.msra.mxu0 %v172
    %602 = vmatpush.msra.mxu0 %v171
    %v603 = vand.u32 %v191, 4294901760
    %v604 = vsub.f32 %v191, %v603
    %v605 = vand.u32 %v604, 4294901760
    %606 = vmatmul.f32.gmra.mxu0 %v605
    %v607 = vpop.f32.mrf.mxu0
    %v608 = vadd.f32 %v585, %v607
    %609 = vdwg.mxu0
    %v610 = vsub.f32 %v186, %v186
    %v611 = vand.u32 %v610, 4294901760
    %612 = vmatpush.msra.mxu0 %v611
    %v613 = vsub.f32 %v185, %v185
    %v614 = vand.u32 %v613, 4294901760
    %615 = vmatpush.msra.mxu0 %v614
    %v616 = vsub.f32 %v184, %v184
    %v617 = vand.u32 %v616, 4294901760
    %618 = vmatpush.msra.mxu0 %v617
    %v619 = vsub.f32 %v183, %v183
    %v620 = vand.u32 %v619, 4294901760
    %621 = vmatpush.msra.mxu0 %v620
    %v622 = vsub.f32 %v182, %v182
    %v623 = vand.u32 %v622, 4294901760
    %624 = vmatpush.msra.mxu0 %v623
    %v625 = vsub.f32 %v181, %v181
    %v626 = vand.u32 %v625, 4294901760
    %627 = vmatpush.msra.mxu0 %v626
    %v628 = vsub.f32 %v180, %v180
    %v629 = vand.u32 %v628, 4294901760
    %630 = vmatpush.msra.mxu0 %v629
    %v631 = vsub.f32 %v179, %v179
    %v632 = vand.u32 %v631, 4294901760
    %633 = vmatpush.msra.mxu0 %v632
    %v634 = vsub.f32 %v178, %v178
    %v635 = vand.u32 %v634, 4294901760
    %636 = vmatpush.msra.mxu0 %v635
    %v637 = vsub.f32 %v177, %v177
    %v638 = vand.u32 %v637, 4294901760
    %639 = vmatpush.msra.mxu0 %v638
    %v640 = vsub.f32 %v176, %v176
    %v641 = vand.u32 %v640, 4294901760
    %642 = vmatpush.msra.mxu0 %v641
    %v643 = vsub.f32 %v175, %v175
    %v644 = vand.u32 %v643, 4294901760
    %645 = vmatpush.msra.mxu0 %v644
    %v646 = vsub.f32 %v174, %v174
    %v647 = vand.u32 %v646, 4294901760
    %648 = vmatpush.msra.mxu0 %v647
    %v649 = vsub.f32 %v173, %v173
    %v650 = vand.u32 %v649, 4294901760
    %651 = vmatpush.msra.mxu0 %v650
    %v652 = vsub.f32 %v172, %v172
    %v653 = vand.u32 %v652, 4294901760
    %654 = vmatpush.msra.mxu0 %v653
    %v655 = vsub.f32 %v171, %v171
    %v656 = vand.u32 %v655, 4294901760
    %657 = vmatpush.msra.mxu0 %v656
    %v658 = vand.u32 %v191, 4294901760
    %659 = vmatmul.f32.gmra.mxu0 %v658
    %v660 = vpop.f32.mrf.mxu0
    %v661 = vadd.f32 %v608, %v660
    %662 = vdwg.mxu0
    %663 = vmatpush.msra.mxu0 %v186
    %664 = vmatpush.msra.mxu0 %v185
    %665 = vmatpush.msra.mxu0 %v184
    %666 = vmatpush.msra.mxu0 %v183
    %667 = vmatpush.msra.mxu0 %v182
    %668 = vmatpush.msra.mxu0 %v181
    %669 = vmatpush.msra.mxu0 %v180
    %670 = vmatpush.msra.mxu0 %v179
    %671 = vmatpush.msra.mxu0 %v178
    %672 = vmatpush.msra.mxu0 %v177
    %673 = vmatpush.msra.mxu0 %v176
    %674 = vmatpush.msra.mxu0 %v175
    %675 = vmatpush.msra.mxu0 %v174
    %676 = vmatpush.msra.mxu0 %v173
    %677 = vmatpush.msra.mxu0 %v172
    %678 = vmatpush.msra.mxu0 %v171
    %v679 = vand.u32 %v191, 4294901760
    %680 = vmatmul.f32.gmra.mxu0 %v679
    %v681 = vpop.f32.mrf.mxu0
    %v682 = vadd.f32 %v661, %v681
    %683 = vdwg.mxu0
    %vm684 = vcmp.eq.s32.totalorder %v21, 0
    %v685 = vsub.f32 0.0, %v682
    %v686 = vsel %vm684, %v682, %v685
    %v687 = vmax.f32 %v686, 0.0
    %v688 = vand.u32 2147483647, %v682
    %v689 = vsub.f32 0.0, %v688
    %v690 = vmul.f32 %v689, 1.442695
    %v691 = vpow.pop %v690
    %v692 = vadd.f32 %v691, 1.0
    %v693 = vlog2.pop %v692
    %v694 = vmul.f32 %v693, 0.6931472
    %v695 = vadd.f32 %v687, %v694
    %p696 = scmp.lt.s32.totalorder 0, 0
    // Predicated region
    $region18: #{tpu_custom_call.1} parent=1 // pred_check
      %p697 = pneg %p696
    $region19: #{tpu_custom_call.1} parent=1 // pred_check_branch
      %699 = sbr.rel (%p697) target = $region21
    $region20: #{tpu_custom_call.1} parent=1 // pred_region
      %vm700 = vcmask 1040384
      %v701 = vsel %vm700, %v695, 0.0
      %702 = vadd.xlane.f32.xlu0 %v701
      %v703 = vpop.xlane.xlu0 %702
      %v704 = vrot.slane %v703, 4
      %v705 = vadd.f32 %v703, %v704
      %v706 = vrot.slane %v705, 2
      %v707 = vadd.f32 %v705, %v706
      %v708 = vrot.slane %v707, 1
      %v709 = vadd.f32 %v707, %v708
      %s710 = vtos %v709
      %v711 = vstv %s710
      %712 = vst [vmem:[#allocation4] sm:$0xff] %v711
    $region21: #{tpu_custom_call.1} parent=1 // pred_fallthru
      _
    %p713 = scmp.eq.s32.totalorder 0, 0
    // Predicated region
    $region22: #{tpu_custom_call.1} parent=1 // pred_check
      %p714 = pneg %p713
    $region23: #{tpu_custom_call.1} parent=1 // pred_check_branch
      %716 = sbr.rel (%p714) target = $region25
    $region24: #{tpu_custom_call.1} parent=1 // pred_region
      %v717 = vstv 0
      %v718 = vadd.s32 %v717, %v23
      %v719 = vmul.u32 %v718, 128
      %v720 = vadd.s32 %v719, %v56
      %s721 = sld [smem:[#allocation2]]
      %v722 = vstv %s721
      %vm723 = vcmp.lt.s32.totalorder %v720, %v722
      %v724 = vsel %vm723, %v695, 0.0
      %vm725 = vcmask 1040384
      %v726 = vsel %vm725, %v724, 0.0
      %727 = vadd.xlane.f32.xlu0 %v726
      %v728 = vpop.xlane.xlu0 %727
      %v729 = vrot.slane %v728, 4
      %v730 = vadd.f32 %v728, %v729
      %v731 = vrot.slane %v730, 2
      %v732 = vadd.f32 %v730, %v731
      %v733 = vrot.slane %v732, 1
      %v734 = vadd.f32 %v732, %v733
      %s735 = vtos %v734
      %v736 = vstv %s735
      %737 = vst [vmem:[#allocation4] sm:$0xff] %v736
    $region25: #{tpu_custom_call.1} parent=1 // pred_fallthru
      _
    // Predicated region
    $region26: #{tpu_custom_call.1} parent=1 // pred_check
      _
    $region27: #{tpu_custom_call.1} parent=1 // pred_check_branch
      %739 = sbr.rel (0) target = $region29
    $region28: #{tpu_custom_call.1} parent=1 // pred_region
      %741 = vsyncadd [#allocation5], 0
      %s743 = sshll.u32 [#allocation4], 4
      %s744 = int_to_ptr.vmem [resolvable:$true] %s743
      %s745 = sshll.u32 %s4, 4
      %s746 = int_to_ptr.hbm [resolvable:$true] %s745
      %748 = dma.vmem_to_hbm [thread:$0]  %s744, 128, %s746, [#allocation5]
    $region29: #{tpu_custom_call.1} parent=1 // pred_fallthru
      _
    // Predicated region
    $region30: #{tpu_custom_call.1} parent=1 // pred_check
      _
    $region31: #{tpu_custom_call.1} parent=1 // pred_check_branch
      %750 = sbr.rel (0) target = $region33
    $region32: #{tpu_custom_call.1} parent=1 // pred_region
      %752 = dma.done [#allocation5], 128
    $region33: #{tpu_custom_call.1} parent=1 // pred_fallthru
      _
    %753 = vsyncpa [#allocation5], 1

</llo_original>
